<compile_context>
chip_gen: v6e
topology: v6e:2x2x1
jax: 0.10.0
libtpu: 0.0.40
codegen_flags: <defaults>
</compile_context>

<pallas_src>
import functools

import jax
import jax.numpy as jnp
from jax import lax
from jax.experimental import pallas as pl
from jax.experimental.pallas import tpu as pltpu

_LANES = 128
_SUBLANES = 8
_CHUNK_ROWS = 64                 # inner-loop chunk: 8 vregs per operand in f32
_MAX_BLOCK_BYTES = 4 << 20       # per-input tile cap (4 MiB -> 8192 f32 rows)
_NUM_GROUPS = 2                  # shard the stream across TensorCores


def _round_up(n, m):
    return ((n + m - 1) // m) * m


def _dice_partial_kernel(x_ref, t_ref, acc_ref, *, rows, tail_lanes, block_rows):
    """Accumulate per-lane partials of [p*t, p, t] into acc_ref (3, 8, 128)."""
    i = pl.program_id(1)

    @pl.when(i == 0)
    def _():
        acc_ref[...] = jnp.zeros_like(acc_ref)

    # Intended (unclamped) global block index.  The index_map clamps the DMA
    # source so out-of-range blocks re-read valid data; the mask below zeroes
    # their contribution.
    b = pl.program_id(0) * pl.num_programs(1) + i
    block_row0 = b * block_rows
    n_chunks = block_rows // _CHUNK_ROWS

    def sigmoid(v):
        # tanh form: one EUP push per vreg (vs. exp + reciprocal).
        return 0.5 * jnp.tanh(0.5 * v) + 0.5

    def fold(v):
        # (chunk, 128) -> (8, 128) per-lane partials; pure VPU adds (the
        # reshape groups whole (8, 128) vreg tiles, so it is layout-free).
        return v.reshape(_CHUNK_ROWS // _SUBLANES, _SUBLANES, _LANES).sum(axis=0)

    def accumulate(masked):
        def body(c, carry):
            a_pt, a_p, a_t = carry
            r0 = pl.multiple_of(c * _CHUNK_ROWS, _CHUNK_ROWS)
            xv = x_ref[pl.ds(r0, _CHUNK_ROWS), :].astype(jnp.float32)
            tv = t_ref[pl.ds(r0, _CHUNK_ROWS), :].astype(jnp.float32)
            p = sigmoid(xv)
            if masked:
                # Row-index based mask (int32 row count cannot overflow for
                # any realistic tensor size) + lane mask for the partial row.
                grow = (block_row0 + r0
                        + lax.broadcasted_iota(jnp.int32, (_CHUNK_ROWS, _LANES), 0))
                if tail_lanes == _LANES:
                    valid = grow < rows
                else:
                    col = lax.broadcasted_iota(jnp.int32, (_CHUNK_ROWS, _LANES), 1)
                    valid = (grow < rows - 1) | ((grow == rows - 1) & (col < tail_lanes))
                p = jnp.where(valid, p, 0.0)
                tv = jnp.where(valid, tv, 0.0)
            return (a_pt + fold(p * tv), a_p + fold(p), a_t + fold(tv))

        zero = jnp.zeros((_SUBLANES, _LANES), jnp.float32)
        return lax.fori_loop(0, n_chunks, body, (zero, zero, zero))

    # Steady-state blocks (fully inside the valid rows, not touching the
    # partial tail row) skip the mask entirely.
    full_limit = rows if tail_lanes == _LANES else rows - 1
    is_full = block_row0 + block_rows <= full_limit

    @pl.when(is_full)
    def _():
        a_pt, a_p, a_t = accumulate(masked=False)
        acc_ref[0] += a_pt
        acc_ref[1] += a_p
        acc_ref[2] += a_t

    @pl.when(jnp.logical_not(is_full))
    def _():
        a_pt, a_p, a_t = accumulate(masked=True)
        acc_ref[0] += a_pt
        acc_ref[1] += a_p
        acc_ref[2] += a_t


def dice_loss(inputs, targets, smooth=1.0):
    total = inputs.size
    x = jnp.ravel(inputs)     # keep native dtype; upcast happens in-kernel
    t = jnp.ravel(targets)

    rows = pl.cdiv(total, _LANES)
    tail_lanes = total - (rows - 1) * _LANES   # valid lanes in the last row
    if rows * _LANES != total:
        # Rare path: element count not lane aligned.  Pad < 128 elements so the
        # (rows, 128) view exists; the in-kernel tail mask zeroes pad values.
        pad = rows * _LANES - total
        x = jnp.pad(x, (0, pad))
        t = jnp.pad(t, (0, pad))
    x = x.reshape(rows, _LANES)
    t = t.reshape(rows, _LANES)

    # Dtype-aware tile sizing: cap each input tile at _MAX_BLOCK_BYTES
    # (8192 rows for f32, 16384 rows for bf16 -> same bytes, same overhead).
    itemsize = max(x.dtype.itemsize, t.dtype.itemsize)
    max_rows = max(_CHUNK_ROWS,
                   (_MAX_BLOCK_BYTES // (_LANES * itemsize)) // _CHUNK_ROWS * _CHUNK_ROWS)
    block_rows = min(max_rows, _round_up(rows, _CHUNK_ROWS))

    num_blocks = pl.cdiv(rows, block_rows)
    groups = min(_NUM_GROUPS, num_blocks)
    inner = pl.cdiv(num_blocks, groups)

    def in_map(g, i):
        # Clamp so a fully out-of-range tail block re-reads valid data; the
        # kernel's mask zeroes its contribution.
        return (jnp.minimum(g * inner + i, num_blocks - 1), 0)

    # VMEM budget: 2 inputs x 2 pipeline buffers x tile, plus headroom for the
    # output slab / internal scratch.  Stays under v7x's 64 MiB physical VMEM
    # and explicitly raises v5e's 16 MiB default scoped limit when needed.
    tile_bytes = block_rows * _LANES * (x.dtype.itemsize + t.dtype.itemsize)
    vmem_limit = min(2 * tile_bytes + (8 << 20), 56 << 20)

    kernel = functools.partial(
        _dice_partial_kernel,
        rows=rows, tail_lanes=tail_lanes, block_rows=block_rows)

    partials = pl.pallas_call(
        kernel,
        out_shape=jax.ShapeDtypeStruct((groups, 3, _SUBLANES, _LANES), jnp.float32),
        grid_spec=pltpu.PrefetchScalarGridSpec(
            num_scalar_prefetch=0,
            grid=(groups, inner),
            in_specs=[
                pl.BlockSpec((block_rows, _LANES), in_map),
                pl.BlockSpec((block_rows, _LANES), in_map),
            ],
            # One (3, 8, 128) accumulator slab per group; leading dim squeezed.
            out_specs=pl.BlockSpec((None, 3, _SUBLANES, _LANES),
                                   lambda g, i: (g, 0, 0, 0)),
        ),
        compiler_params=pltpu.CompilerParams(
            dimension_semantics=("parallel", "arbitrary"),
            vmem_limit_bytes=vmem_limit),
    )(x, t)

    sums = jnp.sum(partials, axis=(0, 2, 3))   # (3,) = [intersection, sum_p, sum_t]
    intersection, sum_p, sum_t = sums[0], sums[1], sums[2]
    dice = (2.0 * intersection + smooth) / (sum_p + sum_t + smooth)
    return 1.0 - dice


if __name__ == "__main__":
    key = jax.random.PRNGKey(0)
    k1, k2 = jax.random.split(key)
    # Small shapes consistent with a segmentation-style forward: (N, C, H, W).
    x = jax.random.normal(k1, (2, 4, 16, 16), dtype=jnp.float32)
    targets = (jax.random.uniform(k2, (2, 4, 16, 16)) > 0.5).astype(jnp.float32)

    loss = jax.block_until_ready(dice_loss(x, targets))

    # Pure-JAX reference check of the PyTorch semantics.
    p = jnp.clip(jax.nn.sigmoid(x), 0.0, 1.0).ravel()
    tt = targets.ravel()
    inter_ref = jnp.sum(p * tt)
    ref = 1.0 - (2.0 * inter_ref + 1.0) / (jnp.sum(p) + jnp.sum(tt) + 1.0)
    assert jnp.allclose(loss, ref, atol=1e-4), (loss, ref)

    print("KERNEL_OK")
</pallas_src>

<mosaic_0001>
module attributes {stable_mosaic.version = 11 : i64} {
  func.func @_dice_partial_kernel(%arg0: i32, %arg1: i32, %arg2: memref<64x128xf32, #tpu.memory_space<vmem>>, %arg3: memref<64x128xf32, #tpu.memory_space<vmem>>, %arg4: memref<1x3x8x128xf32, #tpu.memory_space<vmem>>) attributes {dimension_semantics = [#tpu.dimension_semantics<parallel>, #tpu.dimension_semantics<arbitrary>], iteration_bounds = array<i64: 1, 1>, scalar_prefetch = 0 : i64, scratch_operands = 0 : i64, tpu.core_type = #tpu.core_type<tc>, window_params = [{transform_indices = @transform_0, window_bounds = array<i64: 64, 128>}, {transform_indices = @transform_1, window_bounds = array<i64: 64, 128>}, {transform_indices = @transform_2, window_bounds = array<i64: 1, 3, 8, 128>}]} {
    %c0_i32 = arith.constant 0 : i32
    %0 = arith.cmpi eq, %arg1, %c0_i32 : i32
    %1 = arith.extui %0 : i1 to i32
    %c0_i32_0 = arith.constant 0 : i32
    %2 = arith.cmpi ne, %1, %c0_i32_0 : i32
    scf.if %2 {
      %cst = arith.constant 0.000000e+00 : f32
      %13 = vector.broadcast %cst : f32 to vector<3x8x128xf32>
      %c0 = arith.constant 0 : index
      %c0_4 = arith.constant 0 : index
      %c0_5 = arith.constant 0 : index
      %c0_6 = arith.constant 0 : index
      %14 = vector.load %arg4[%c0, %c0_4, %c0_5, %c0_6] : memref<1x3x8x128xf32, #tpu.memory_space<vmem>>, vector<1x3x8x128xf32>
      %15 = vector.shape_cast %14 : vector<1x3x8x128xf32> to vector<3x8x128xf32>
      %16 = vector.shape_cast %13 : vector<3x8x128xf32> to vector<1x3x8x128xf32>
      tpu.vector_store %arg4[%c0, %c0_4, %c0_5, %c0_6], %16 {strides = array<i32>} : memref<1x3x8x128xf32, #tpu.memory_space<vmem>>, vector<1x3x8x128xf32>,
    } else {
    }
    %c1_i32 = arith.constant 1 : i32
    %3 = arith.muli %arg0, %c1_i32 : i32
    %4 = arith.addi %3, %arg1 : i32
    %c64_i32 = arith.constant 64 : i32
    %5 = arith.muli %4, %c64_i32 : i32
    %c64_i32_1 = arith.constant 64 : i32
    %6 = arith.addi %5, %c64_i32_1 : i32
    %c16_i32 = arith.constant 16 : i32
    %7 = arith.cmpi sle, %6, %c16_i32 : i32
    %8 = arith.extui %7 : i1 to i32
    %c0_i32_2 = arith.constant 0 : i32
    %9 = arith.cmpi ne, %8, %c0_i32_2 : i32
    scf.if %9 {
      %cst = arith.constant 0.000000e+00 : f32
      %13 = vector.broadcast %cst : f32 to vector<8x128xf32>
      %c0_i32_4 = arith.constant 0 : i32
      %c64_i32_5 = arith.constant 64 : i32
      %14 = arith.muli %c0_i32_4, %c64_i32_5 : i32
      %15 = tpu.assume_multiple %14, 64 : i32
      %16 = arith.index_cast %15 : i32 to index
      %c0 = arith.constant 0 : index
      %17 = vector.load %arg2[%16, %c0] : memref<64x128xf32, #tpu.memory_space<vmem>>, vector<64x128xf32>
      %18 = arith.index_cast %15 : i32 to index
      %c0_6 = arith.constant 0 : index
      %19 = vector.load %arg3[%18, %c0_6] : memref<64x128xf32, #tpu.memory_space<vmem>>, vector<64x128xf32>
      %cst_7 = arith.constant 5.000000e-01 : f32
      %20 = vector.broadcast %cst_7 : f32 to vector<64x128xf32>
      %21 = arith.mulf %20, %17 : vector<64x128xf32>
      %22 = math.tanh %21 : vector<64x128xf32>
      %cst_8 = arith.constant 5.000000e-01 : f32
      %23 = vector.broadcast %cst_8 : f32 to vector<64x128xf32>
      %24 = arith.mulf %23, %22 : vector<64x128xf32>
      %cst_9 = arith.constant 5.000000e-01 : f32
      %25 = vector.broadcast %cst_9 : f32 to vector<64x128xf32>
      %26 = arith.addf %24, %25 : vector<64x128xf32>
      %27 = arith.mulf %26, %19 : vector<64x128xf32>
      %28 = vector.shape_cast %27 : vector<64x128xf32> to vector<8x8x128xf32>
      %cst_10 = arith.constant dense<0.000000e+00> : vector<8x128xf32>
      %29 = vector.multi_reduction <add>, %28, %cst_10 [0] : vector<8x8x128xf32> to vector<8x128xf32>
      %30 = arith.addf %13, %29 : vector<8x128xf32>
      %31 = vector.shape_cast %26 : vector<64x128xf32> to vector<8x8x128xf32>
      %cst_11 = arith.constant dense<0.000000e+00> : vector<8x128xf32>
      %32 = vector.multi_reduction <add>, %31, %cst_11 [0] : vector<8x8x128xf32> to vector<8x128xf32>
      %33 = arith.addf %13, %32 : vector<8x128xf32>
      %34 = vector.shape_cast %19 : vector<64x128xf32> to vector<8x8x128xf32>
      %cst_12 = arith.constant dense<0.000000e+00> : vector<8x128xf32>
      %35 = vector.multi_reduction <add>, %34, %cst_12 [0] : vector<8x8x128xf32> to vector<8x128xf32>
      %36 = arith.addf %13, %35 : vector<8x128xf32>
      %c1_i32_13 = arith.constant 1 : i32
      %c0_14 = arith.constant 0 : index
      %c0_15 = arith.constant 0 : index
      %c0_16 = arith.constant 0 : index
      %c0_17 = arith.constant 0 : index
      %37 = vector.load %arg4[%c0_14, %c0_15, %c0_16, %c0_17] : memref<1x3x8x128xf32, #tpu.memory_space<vmem>>, vector<1x1x8x128xf32>
      %38 = vector.shape_cast %37 : vector<1x1x8x128xf32> to vector<8x128xf32>
      %39 = arith.addf %38, %30 : vector<8x128xf32>
      %c0_18 = arith.constant 0 : index
      %c0_19 = arith.constant 0 : index
      %c0_20 = arith.constant 0 : index
      %c0_21 = arith.constant 0 : index
      %40 = vector.load %arg4[%c0_18, %c0_19, %c0_20, %c0_21] : memref<1x3x8x128xf32, #tpu.memory_space<vmem>>, vector<1x1x8x128xf32>
      %41 = vector.shape_cast %40 : vector<1x1x8x128xf32> to vector<8x128xf32>
      %42 = vector.shape_cast %39 : vector<8x128xf32> to vector<1x1x8x128xf32>
      tpu.vector_store %arg4[%c0_18, %c0_19, %c0_20, %c0_21], %42 {strides = array<i32>} : memref<1x3x8x128xf32, #tpu.memory_space<vmem>>, vector<1x1x8x128xf32>,
      %c0_22 = arith.constant 0 : index
      %c1 = arith.constant 1 : index
      %c0_23 = arith.constant 0 : index
      %c0_24 = arith.constant 0 : index
      %43 = vector.load %arg4[%c0_22, %c1, %c0_23, %c0_24] : memref<1x3x8x128xf32, #tpu.memory_space<vmem>>, vector<1x1x8x128xf32>
      %44 = vector.shape_cast %43 : vector<1x1x8x128xf32> to vector<8x128xf32>
      %45 = arith.addf %44, %33 : vector<8x128xf32>
      %c0_25 = arith.constant 0 : index
      %c1_26 = arith.constant 1 : index
      %c0_27 = arith.constant 0 : index
      %c0_28 = arith.constant 0 : index
      %46 = vector.load %arg4[%c0_25, %c1_26, %c0_27, %c0_28] : memref<1x3x8x128xf32, #tpu.memory_space<vmem>>, vector<1x1x8x128xf32>
      %47 = vector.shape_cast %46 : vector<1x1x8x128xf32> to vector<8x128xf32>
      %48 = vector.shape_cast %45 : vector<8x128xf32> to vector<1x1x8x128xf32>
      tpu.vector_store %arg4[%c0_25, %c1_26, %c0_27, %c0_28], %48 {strides = array<i32>} : memref<1x3x8x128xf32, #tpu.memory_space<vmem>>, vector<1x1x8x128xf32>,
      %c0_29 = arith.constant 0 : index
      %c2 = arith.constant 2 : index
      %c0_30 = arith.constant 0 : index
      %c0_31 = arith.constant 0 : index
      %49 = vector.load %arg4[%c0_29, %c2, %c0_30, %c0_31] : memref<1x3x8x128xf32, #tpu.memory_space<vmem>>, vector<1x1x8x128xf32>
      %50 = vector.shape_cast %49 : vector<1x1x8x128xf32> to vector<8x128xf32>
      %51 = arith.addf %50, %36 : vector<8x128xf32>
      %c0_32 = arith.constant 0 : index
      %c2_33 = arith.constant 2 : index
      %c0_34 = arith.constant 0 : index
      %c0_35 = arith.constant 0 : index
      %52 = vector.load %arg4[%c0_32, %c2_33, %c0_34, %c0_35] : memref<1x3x8x128xf32, #tpu.memory_space<vmem>>, vector<1x1x8x128xf32>
      %53 = vector.shape_cast %52 : vector<1x1x8x128xf32> to vector<8x128xf32>
      %54 = vector.shape_cast %51 : vector<8x128xf32> to vector<1x1x8x128xf32>
      tpu.vector_store %arg4[%c0_32, %c2_33, %c0_34, %c0_35], %54 {strides = array<i32>} : memref<1x3x8x128xf32, #tpu.memory_space<vmem>>, vector<1x1x8x128xf32>,
    } else {
    }
    %true = arith.constant true
    %10 = arith.xori %7, %true : i1
    %11 = arith.extui %10 : i1 to i32
    %c0_i32_3 = arith.constant 0 : i32
    %12 = arith.cmpi ne, %11, %c0_i32_3 : i32
    scf.if %12 {
      %cst = arith.constant 0.000000e+00 : f32
      %13 = vector.broadcast %cst : f32 to vector<8x128xf32>
      %c0_i32_4 = arith.constant 0 : i32
      %c64_i32_5 = arith.constant 64 : i32
      %14 = arith.muli %c0_i32_4, %c64_i32_5 : i32
      %15 = tpu.assume_multiple %14, 64 : i32
      %16 = arith.index_cast %15 : i32 to index
      %c0 = arith.constant 0 : index
      %17 = vector.load %arg2[%16, %c0] : memref<64x128xf32, #tpu.memory_space<vmem>>, vector<64x128xf32>
      %18 = arith.index_cast %15 : i32 to index
      %c0_6 = arith.constant 0 : index
      %19 = vector.load %arg3[%18, %c0_6] : memref<64x128xf32, #tpu.memory_space<vmem>>, vector<64x128xf32>
      %cst_7 = arith.constant 5.000000e-01 : f32
      %20 = vector.broadcast %cst_7 : f32 to vector<64x128xf32>
      %21 = arith.mulf %20, %17 : vector<64x128xf32>
      %22 = math.tanh %21 : vector<64x128xf32>
      %cst_8 = arith.constant 5.000000e-01 : f32
      %23 = vector.broadcast %cst_8 : f32 to vector<64x128xf32>
      %24 = arith.mulf %23, %22 : vector<64x128xf32>
      %cst_9 = arith.constant 5.000000e-01 : f32
      %25 = vector.broadcast %cst_9 : f32 to vector<64x128xf32>
      %26 = arith.addf %24, %25 : vector<64x128xf32>
      %27 = arith.addi %5, %15 : i32
      %28 = tpu.iota {dimensions = array<i32: 0>} : vector<64x128xi32>
      %29 = vector.broadcast %27 : i32 to vector<64x128xi32>
      %30 = arith.addi %29, %28 : vector<64x128xi32>
      %c16_i32_10 = arith.constant 16 : i32
      %31 = vector.broadcast %c16_i32_10 : i32 to vector<64x128xi32>
      %32 = arith.cmpi slt, %30, %31 : vector<64x128xi32>
      %cst_11 = arith.constant 0.000000e+00 : f32
      %33 = vector.broadcast %cst_11 : f32 to vector<64x128xf32>
      %34 = arith.select %32, %26, %33 : vector<64x128xi1>, vector<64x128xf32>
      %cst_12 = arith.constant 0.000000e+00 : f32
      %35 = vector.broadcast %cst_12 : f32 to vector<64x128xf32>
      %36 = arith.select %32, %19, %35 : vector<64x128xi1>, vector<64x128xf32>
      %37 = arith.mulf %34, %36 : vector<64x128xf32>
      %38 = vector.shape_cast %37 : vector<64x128xf32> to vector<8x8x128xf32>
      %cst_13 = arith.constant dense<0.000000e+00> : vector<8x128xf32>
      %39 = vector.multi_reduction <add>, %38, %cst_13 [0] : vector<8x8x128xf32> to vector<8x128xf32>
      %40 = arith.addf %13, %39 : vector<8x128xf32>
      %41 = vector.shape_cast %34 : vector<64x128xf32> to vector<8x8x128xf32>
      %cst_14 = arith.constant dense<0.000000e+00> : vector<8x128xf32>
      %42 = vector.multi_reduction <add>, %41, %cst_14 [0] : vector<8x8x128xf32> to vector<8x128xf32>
      %43 = arith.addf %13, %42 : vector<8x128xf32>
      %44 = vector.shape_cast %36 : vector<64x128xf32> to vector<8x8x128xf32>
      %cst_15 = arith.constant dense<0.000000e+00> : vector<8x128xf32>
      %45 = vector.multi_reduction <add>, %44, %cst_15 [0] : vector<8x8x128xf32> to vector<8x128xf32>
      %46 = arith.addf %13, %45 : vector<8x128xf32>
      %c1_i32_16 = arith.constant 1 : i32
      %c0_17 = arith.constant 0 : index
      %c0_18 = arith.constant 0 : index
      %c0_19 = arith.constant 0 : index
      %c0_20 = arith.constant 0 : index
      %47 = vector.load %arg4[%c0_17, %c0_18, %c0_19, %c0_20] : memref<1x3x8x128xf32, #tpu.memory_space<vmem>>, vector<1x1x8x128xf32>
      %48 = vector.shape_cast %47 : vector<1x1x8x128xf32> to vector<8x128xf32>
      %49 = arith.addf %48, %40 : vector<8x128xf32>
      %c0_21 = arith.constant 0 : index
      %c0_22 = arith.constant 0 : index
      %c0_23 = arith.constant 0 : index
      %c0_24 = arith.constant 0 : index
      %50 = vector.load %arg4[%c0_21, %c0_22, %c0_23, %c0_24] : memref<1x3x8x128xf32, #tpu.memory_space<vmem>>, vector<1x1x8x128xf32>
      %51 = vector.shape_cast %50 : vector<1x1x8x128xf32> to vector<8x128xf32>
      %52 = vector.shape_cast %49 : vector<8x128xf32> to vector<1x1x8x128xf32>
      tpu.vector_store %arg4[%c0_21, %c0_22, %c0_23, %c0_24], %52 {strides = array<i32>} : memref<1x3x8x128xf32, #tpu.memory_space<vmem>>, vector<1x1x8x128xf32>,
      %c0_25 = arith.constant 0 : index
      %c1 = arith.constant 1 : index
      %c0_26 = arith.constant 0 : index
      %c0_27 = arith.constant 0 : index
      %53 = vector.load %arg4[%c0_25, %c1, %c0_26, %c0_27] : memref<1x3x8x128xf32, #tpu.memory_space<vmem>>, vector<1x1x8x128xf32>
      %54 = vector.shape_cast %53 : vector<1x1x8x128xf32> to vector<8x128xf32>
      %55 = arith.addf %54, %43 : vector<8x128xf32>
      %c0_28 = arith.constant 0 : index
      %c1_29 = arith.constant 1 : index
      %c0_30 = arith.constant 0 : index
      %c0_31 = arith.constant 0 : index
      %56 = vector.load %arg4[%c0_28, %c1_29, %c0_30, %c0_31] : memref<1x3x8x128xf32, #tpu.memory_space<vmem>>, vector<1x1x8x128xf32>
      %57 = vector.shape_cast %56 : vector<1x1x8x128xf32> to vector<8x128xf32>
      %58 = vector.shape_cast %55 : vector<8x128xf32> to vector<1x1x8x128xf32>
      tpu.vector_store %arg4[%c0_28, %c1_29, %c0_30, %c0_31], %58 {strides = array<i32>} : memref<1x3x8x128xf32, #tpu.memory_space<vmem>>, vector<1x1x8x128xf32>,
      %c0_32 = arith.constant 0 : index
      %c2 = arith.constant 2 : index
      %c0_33 = arith.constant 0 : index
      %c0_34 = arith.constant 0 : index
      %59 = vector.load %arg4[%c0_32, %c2, %c0_33, %c0_34] : memref<1x3x8x128xf32, #tpu.memory_space<vmem>>, vector<1x1x8x128xf32>
      %60 = vector.shape_cast %59 : vector<1x1x8x128xf32> to vector<8x128xf32>
      %61 = arith.addf %60, %46 : vector<8x128xf32>
      %c0_35 = arith.constant 0 : index
      %c2_36 = arith.constant 2 : index
      %c0_37 = arith.constant 0 : index
      %c0_38 = arith.constant 0 : index
      %62 = vector.load %arg4[%c0_35, %c2_36, %c0_37, %c0_38] : memref<1x3x8x128xf32, #tpu.memory_space<vmem>>, vector<1x1x8x128xf32>
      %63 = vector.shape_cast %62 : vector<1x1x8x128xf32> to vector<8x128xf32>
      %64 = vector.shape_cast %61 : vector<8x128xf32> to vector<1x1x8x128xf32>
      tpu.vector_store %arg4[%c0_35, %c2_36, %c0_37, %c0_38], %64 {strides = array<i32>} : memref<1x3x8x128xf32, #tpu.memory_space<vmem>>, vector<1x1x8x128xf32>,
    } else {
    }
    return
  }
  func.func @transform_0(%arg0: i32, %arg1: i32) -> (i32, i32) {
    %c1_i32 = arith.constant 1 : i32
    %0 = arith.muli %arg0, %c1_i32 : i32
    %1 = arith.addi %0, %arg1 : i32
    %c0_i32 = arith.constant 0 : i32
    %2 = arith.minsi %1, %c0_i32 : i32
    %c0_i32_0 = arith.constant 0 : i32
    %c0_i32_1 = arith.constant 0 : i32
    return %2, %c0_i32_0 : i32, i32
  }
  func.func @transform_1(%arg0: i32, %arg1: i32) -> (i32, i32) {
    %c1_i32 = arith.constant 1 : i32
    %0 = arith.muli %arg0, %c1_i32 : i32
    %1 = arith.addi %0, %arg1 : i32
    %c0_i32 = arith.constant 0 : i32
    %2 = arith.minsi %1, %c0_i32 : i32
    %c0_i32_0 = arith.constant 0 : i32
    %c0_i32_1 = arith.constant 0 : i32
    return %2, %c0_i32_0 : i32, i32
  }
  func.func @transform_2(%arg0: i32, %arg1: i32) -> (i32, i32, i32, i32) {
    %c0_i32 = arith.constant 0 : i32
    %c0_i32_0 = arith.constant 0 : i32
    %c0_i32_1 = arith.constant 0 : i32
    %c0_i32_2 = arith.constant 0 : i32
    return %arg0, %c0_i32, %c0_i32_0, %c0_i32_1 : i32, i32, i32, i32
  }
}

</mosaic_0001>

<llo_original>
// kernel: tpu_custom_call.1
$region0: #{tpu_custom_call.1}
  #allocation0 [shape = 'u32[]', space=smem, size = 0x4, offset = 0x4, fixed_abs, tag = 'smem constant byte address 0x4 - core index']
  #allocation1 [shape = 'u32[144,128]{1,0:T(1,128)}', space=vmem, size = 0x12000, scoped, tag = 'internal scratch']
  %s0 = inlined_call_operand.hbm [shape: f32[16,128], index: 0, kind: input, shape index: {}]
  %s1 = inlined_call_operand.hbm [shape: f32[16,128], index: 1, kind: input, shape index: {}]
  %s2 = inlined_call_operand.hbm [shape: f32[1,3,8,128], index: 2, kind: output, shape index: {}]
  %s3 = sld [smem:[#allocation0]]
  $region38: #{tpu_custom_call.1} parent=0
    _
  %s5 = ssub.s32 1, %s3
  %s6 = scalar_select 0, %s5, %s3
  $region1: #{tpu_custom_call.1} parent=0
    #allocation2 [shape = 'u8[32768]{0}', space=vmem, size = 0x8000, scoped, tag = 'input window, operand 0, single buffered']
    #allocation3 [shape = 's32[1]{0}', space=sflag, size = 0x4, scoped, tag = 'scoped memory for tpu_custom_call.1']
    #allocation4 [shape = 's32[1]{0}', space=sflag, size = 0x4, scoped, tag = 'scoped memory for tpu_custom_call.1']
    #allocation5 [shape = 'u8[32768]{0}', space=vmem, size = 0x8000, scoped, tag = 'input window, operand 1, single buffered']
    #allocation6 [shape = 's32[1]{0}', space=sflag, size = 0x4, scoped, tag = 'scoped memory for tpu_custom_call.1']
    #allocation7 [shape = 'u8[12288]{0}', space=vmem, size = 0x3000, scoped, tag = 'output window, operand 0, single buffered']
    %7 = vsyncpa [#allocation3], 0
    %8 = vsyncpa [#allocation6], 0
    %9 = vsyncpa [#allocation4], 0
    // Predicated region
    $region2: #{tpu_custom_call.1} parent=1 // pred_check
      _
    $region3: #{tpu_custom_call.1} parent=1 // pred_check_branch
      %11 = sbr.rel (0) target = $region5
    $region4: #{tpu_custom_call.1} parent=1 // pred_region
      %s12 = sadd.s32 0, 0
      %p13 = scmp.lt.s32.totalorder %s12, 0
      %s14 = scalar_select %p13, %s12, 0
      %s15 = smul.u32 8, %s14
      %s16 = ssub.s32 2, %s15
      %s17 = smul.u32 128, %s16
      %s19 = ssub.s32 1024, %s17
      %20 = vsyncadd [#allocation3], %s19
      %p21 = scmp.ne.s32.totalorder 0, %s17
      %s22 = smul.addr %s15, 128
      %s23 = scalar_lea.hbm %s0, %s22
      %s24 = smul.u32 8, %s16
      %s25 = sshll.u32 [#allocation2], 4
      %s26 = int_to_ptr.vmem [resolvable:$true] %s25
      %s27 = sshll.u32 %s24, 4
      %31 = dma.hbm_to_vmem [thread:$0]  (%p21), %s23, %s27, %s26, [#allocation3], 128, 128, 8
    $region5: #{tpu_custom_call.1} parent=1 // pred_fallthru
      _
    // Predicated region
    $region6: #{tpu_custom_call.1} parent=1 // pred_check
      _
    $region7: #{tpu_custom_call.1} parent=1 // pred_check_branch
      %33 = sbr.rel (0) target = $region9
    $region8: #{tpu_custom_call.1} parent=1 // pred_region
      %s34 = sadd.s32 0, 0
      %p35 = scmp.lt.s32.totalorder %s34, 0
      %s36 = scalar_select %p35, %s34, 0
      %s37 = smul.u32 8, %s36
      %s38 = ssub.s32 2, %s37
      %s39 = smul.u32 128, %s38
      %s41 = ssub.s32 1024, %s39
      %42 = vsyncadd [#allocation6], %s41
      %p43 = scmp.ne.s32.totalorder 0, %s39
      %s44 = smul.addr %s37, 128
      %s45 = scalar_lea.hbm %s1, %s44
      %s46 = smul.u32 8, %s38
      %s47 = sshll.u32 [#allocation5], 4
      %s48 = int_to_ptr.vmem [resolvable:$true] %s47
      %s49 = sshll.u32 %s46, 4
      %53 = dma.hbm_to_vmem [thread:$0]  (%p43), %s45, %s49, %s48, [#allocation6], 128, 128, 8
    $region9: #{tpu_custom_call.1} parent=1 // pred_fallthru
      _
    // Predicated region
    $region10: #{tpu_custom_call.1} parent=1 // pred_check
      _
    $region11: #{tpu_custom_call.1} parent=1 // pred_check_branch
      %55 = sbr.rel (0) target = $region13
    $region12: #{tpu_custom_call.1} parent=1 // pred_region
      %56 = dma.done [#allocation3], 1024
    $region13: #{tpu_custom_call.1} parent=1 // pred_fallthru
      _
    // Predicated region
    $region14: #{tpu_custom_call.1} parent=1 // pred_check
      _
    $region15: #{tpu_custom_call.1} parent=1 // pred_check_branch
      %58 = sbr.rel (0) target = $region17
    $region16: #{tpu_custom_call.1} parent=1 // pred_region
      %59 = dma.done [#allocation6], 1024
    $region17: #{tpu_custom_call.1} parent=1 // pred_fallthru
      _
    %s60 = sadd.s32 0, 0
    %p61 = scmp.lt.s32.totalorder %s60, 0
    %s62 = scalar_select %p61, %s60, 0
    %s63 = smul.u32 8, %s62
    %s64 = ssub.s32 2, %s63
    %s65 = smul.u32 128, %s64
    %s66 = sadd.s32 0, 0
    %p67 = scmp.lt.s32.totalorder %s66, 0
    %s68 = scalar_select %p67, %s66, 0
    %s69 = smul.u32 8, %s68
    %s70 = ssub.s32 2, %s69
    %s71 = smul.u32 128, %s70
    %p72 = scmp.eq.s32.totalorder 0, 0
    // Predicated region
    $region18: #{tpu_custom_call.1} parent=1 // pred_check
      %p73 = pneg %p72
    $region19: #{tpu_custom_call.1} parent=1 // pred_check_branch
      %75 = sbr.rel (%p73) target = $region21
    $region20: #{tpu_custom_call.1} parent=1 // pred_region
      %76 = vst [vmem:[#allocation7] sm:$0xff] 0.0
      %77 = vst [vmem:[#allocation7 + $0x8] sm:$0xff] 0.0
      %78 = vst [vmem:[#allocation7 + $0x10] sm:$0xff] 0.0
    $region21: #{tpu_custom_call.1} parent=1 // pred_fallthru
      _
    %s79 = sadd.s32 0, 0
    %s80 = smul.u32 %s79, 64
    %s81 = sadd.s32 %s80, 64
    %p82 = scmp.le.s32.totalorder %s81, 16
    // Predicated region
    $region22: #{tpu_custom_call.1} parent=1 // pred_check
      %p83 = pneg %p82
    $region23: #{tpu_custom_call.1} parent=1 // pred_check_branch
      %85 = sbr.rel (%p83) target = $region25
    $region24: #{tpu_custom_call.1} parent=1 // pred_region
      %v86 = vld [vmem:[#allocation2] sm:$0xff]
      %v87 = vld [vmem:[#allocation2 + $0x8] sm:$0xff]
      %v88 = vld [vmem:[#allocation2 + $0x10] sm:$0xff]
      %v89 = vld [vmem:[#allocation2 + $0x18] sm:$0xff]
      %v90 = vld [vmem:[#allocation2 + $0x20] sm:$0xff]
      %v91 = vld [vmem:[#allocation2 + $0x28] sm:$0xff]
      %v92 = vld [vmem:[#allocation2 + $0x30] sm:$0xff]
      %v93 = vld [vmem:[#allocation2 + $0x38] sm:$0xff]
      %v94 = vld [vmem:[#allocation5] sm:$0xff]
      %v95 = vld [vmem:[#allocation5 + $0x8] sm:$0xff]
      %v96 = vld [vmem:[#allocation5 + $0x10] sm:$0xff]
      %v97 = vld [vmem:[#allocation5 + $0x18] sm:$0xff]
      %v98 = vld [vmem:[#allocation5 + $0x20] sm:$0xff]
      %v99 = vld [vmem:[#allocation5 + $0x28] sm:$0xff]
      %v100 = vld [vmem:[#allocation5 + $0x30] sm:$0xff]
      %v101 = vld [vmem:[#allocation5 + $0x38] sm:$0xff]
      %v102 = vmul.f32 %v86, 0.5
      %v103 = vmul.f32 %v87, 0.5
      %v104 = vmul.f32 %v88, 0.5
      %v105 = vmul.f32 %v89, 0.5
      %v106 = vmul.f32 %v90, 0.5
      %v107 = vmul.f32 %v91, 0.5
      %v108 = vmul.f32 %v92, 0.5
      %v109 = vmul.f32 %v93, 0.5
      %v110 = vtanh.pop %v102
      %v111 = vtanh.pop %v103
      %v112 = vtanh.pop %v104
      %v113 = vtanh.pop %v105
      %v114 = vtanh.pop %v106
      %v115 = vtanh.pop %v107
      %v116 = vtanh.pop %v108
      %v117 = vtanh.pop %v109
      %v118 = vmul.f32 %v110, 0.5
      %v119 = vmul.f32 %v111, 0.5
      %v120 = vmul.f32 %v112, 0.5
      %v121 = vmul.f32 %v113, 0.5
      %v122 = vmul.f32 %v114, 0.5
      %v123 = vmul.f32 %v115, 0.5
      %v124 = vmul.f32 %v116, 0.5
      %v125 = vmul.f32 %v117, 0.5
      %v126 = vadd.f32 %v118, 0.5
      %v127 = vadd.f32 %v119, 0.5
      %v128 = vadd.f32 %v120, 0.5
      %v129 = vadd.f32 %v121, 0.5
      %v130 = vadd.f32 %v122, 0.5
      %v131 = vadd.f32 %v123, 0.5
      %v132 = vadd.f32 %v124, 0.5
      %v133 = vadd.f32 %v125, 0.5
      %v134 = vmul.f32 %v126, %v94
      %v135 = vmul.f32 %v127, %v95
      %v136 = vmul.f32 %v128, %v96
      %v137 = vmul.f32 %v129, %v97
      %v138 = vmul.f32 %v130, %v98
      %v139 = vmul.f32 %v131, %v99
      %v140 = vmul.f32 %v132, %v100
      %v141 = vmul.f32 %v133, %v101
      %v142 = vadd.f32 %v134, %v135
      %v143 = vadd.f32 %v142, %v136
      %v144 = vadd.f32 %v143, %v137
      %v145 = vadd.f32 %v144, %v138
      %v146 = vadd.f32 %v145, %v139
      %v147 = vadd.f32 %v146, %v140
      %v148 = vadd.f32 %v147, %v141
      %v149 = vadd.f32 %v148, 0.0
      %v150 = vadd.f32 %v126, %v127
      %v151 = vadd.f32 %v150, %v128
      %v152 = vadd.f32 %v151, %v129
      %v153 = vadd.f32 %v152, %v130
      %v154 = vadd.f32 %v153, %v131
      %v155 = vadd.f32 %v154, %v132
      %v156 = vadd.f32 %v155, %v133
      %v157 = vadd.f32 %v156, 0.0
      %v158 = vadd.f32 %v94, %v95
      %v159 = vadd.f32 %v158, %v96
      %v160 = vadd.f32 %v159, %v97
      %v161 = vadd.f32 %v160, %v98
      %v162 = vadd.f32 %v161, %v99
      %v163 = vadd.f32 %v162, %v100
      %v164 = vadd.f32 %v163, %v101
      %v165 = vadd.f32 %v164, 0.0
      %v166 = vld [vmem:[#allocation7] sm:$0xff]
      %v167 = vadd.f32 %v166, %v149
      %168 = vst [vmem:[#allocation7] sm:$0xff] %v167
      %s169 = scalar_lea.vmem [#allocation7], 8
      %v170 = vld [vmem:[%s169] sm:$0xff]
      %v171 = vadd.f32 %v170, %v157
      %172 = vst [vmem:[%s169] sm:$0xff] %v171
      %s173 = scalar_lea.vmem [#allocation7], 16
      %v174 = vld [vmem:[%s173] sm:$0xff]
      %v175 = vadd.f32 %v174, %v165
      %176 = vst [vmem:[%s173] sm:$0xff] %v175
    $region25: #{tpu_custom_call.1} parent=1 // pred_fallthru
      _
    %p177 = scmp.gt.s32.totalorder %s81, 16
    // Predicated region
    $region26: #{tpu_custom_call.1} parent=1 // pred_check
      %p178 = pneg %p177
    $region27: #{tpu_custom_call.1} parent=1 // pred_check_branch
      %180 = sbr.rel (%p178) target = $region29
    $region28: #{tpu_custom_call.1} parent=1 // pred_region
      %v181 = vld [vmem:[#allocation2] sm:$0xff]
      %v182 = vld [vmem:[#allocation2 + $0x8] sm:$0xff]
      %v183 = vld [vmem:[#allocation2 + $0x10] sm:$0xff]
      %v184 = vld [vmem:[#allocation2 + $0x18] sm:$0xff]
      %v185 = vld [vmem:[#allocation2 + $0x20] sm:$0xff]
      %v186 = vld [vmem:[#allocation2 + $0x28] sm:$0xff]
      %v187 = vld [vmem:[#allocation2 + $0x30] sm:$0xff]
      %v188 = vld [vmem:[#allocation2 + $0x38] sm:$0xff]
      %v189 = vld [vmem:[#allocation5] sm:$0xff]
      %v190 = vld [vmem:[#allocation5 + $0x8] sm:$0xff]
      %v191 = vld [vmem:[#allocation5 + $0x10] sm:$0xff]
      %v192 = vld [vmem:[#allocation5 + $0x18] sm:$0xff]
      %v193 = vld [vmem:[#allocation5 + $0x20] sm:$0xff]
      %v194 = vld [vmem:[#allocation5 + $0x28] sm:$0xff]
      %v195 = vld [vmem:[#allocation5 + $0x30] sm:$0xff]
      %v196 = vld [vmem:[#allocation5 + $0x38] sm:$0xff]
      %v197 = vmul.f32 %v181, 0.5
      %v198 = vmul.f32 %v182, 0.5
      %v199 = vmul.f32 %v183, 0.5
      %v200 = vmul.f32 %v184, 0.5
      %v201 = vmul.f32 %v185, 0.5
      %v202 = vmul.f32 %v186, 0.5
      %v203 = vmul.f32 %v187, 0.5
      %v204 = vmul.f32 %v188, 0.5
      %v205 = vtanh.pop %v197
      %v206 = vtanh.pop %v198
      %v207 = vtanh.pop %v199
      %v208 = vtanh.pop %v200
      %v209 = vtanh.pop %v201
      %v210 = vtanh.pop %v202
      %v211 = vtanh.pop %v203
      %v212 = vtanh.pop %v204
      %v213 = vmul.f32 %v205, 0.5
      %v214 = vmul.f32 %v206, 0.5
      %v215 = vmul.f32 %v207, 0.5
      %v216 = vmul.f32 %v208, 0.5
      %v217 = vmul.f32 %v209, 0.5
      %v218 = vmul.f32 %v210, 0.5
      %v219 = vmul.f32 %v211, 0.5
      %v220 = vmul.f32 %v212, 0.5
      %v221 = vadd.f32 %v213, 0.5
      %v222 = vadd.f32 %v214, 0.5
      %v223 = vadd.f32 %v215, 0.5
      %v224 = vadd.f32 %v216, 0.5
      %v225 = vadd.f32 %v217, 0.5
      %v226 = vadd.f32 %v218, 0.5
      %v227 = vadd.f32 %v219, 0.5
      %v228 = vadd.f32 %v220, 0.5
      %s229 = sadd.s32 %s80, 0
      %v230 = vlaneseq
      %v231 = vshrl.u32 %v230, 7
      %v232 = vadd.s32 %v231, 8
      %v233 = vadd.s32 %v231, 16
      %v234 = vadd.s32 %v231, 24
      %v235 = vadd.s32 %v231, 32
      %v236 = vadd.s32 %v231, 40
      %v237 = vadd.s32 %v231, 48
      %v238 = vadd.s32 %v231, 56
      %v239 = vstv %s229
      %v240 = vadd.s32 %v239, %v231
      %v241 = vadd.s32 %v239, %v232
      %v242 = vadd.s32 %v239, %v233
      %v243 = vadd.s32 %v239, %v234
      %v244 = vadd.s32 %v239, %v235
      %v245 = vadd.s32 %v239, %v236
      %v246 = vadd.s32 %v239, %v237
      %v247 = vadd.s32 %v239, %v238
      %vm248 = vcmp.lt.s32.totalorder %v240, 16
      %vm249 = vcmp.lt.s32.totalorder %v241, 16
      %vm250 = vcmp.lt.s32.totalorder %v242, 16
      %vm251 = vcmp.lt.s32.totalorder %v243, 16
      %vm252 = vcmp.lt.s32.totalorder %v244, 16
      %vm253 = vcmp.lt.s32.totalorder %v245, 16
      %vm254 = vcmp.lt.s32.totalorder %v246, 16
      %vm255 = vcmp.lt.s32.totalorder %v247, 16
      %v256 = vsel %vm248, %v221, 0.0
      %v257 = vsel %vm249, %v222, 0.0
      %v258 = vsel %vm250, %v223, 0.0
      %v259 = vsel %vm251, %v224, 0.0
      %v260 = vsel %vm252, %v225, 0.0
      %v261 = vsel %vm253, %v226, 0.0
      %v262 = vsel %vm254, %v227, 0.0
      %v263 = vsel %vm255, %v228, 0.0
      %v264 = vsel %vm248, %v189, 0.0
      %v265 = vsel %vm249, %v190, 0.0
      %v266 = vsel %vm250, %v191, 0.0
      %v267 = vsel %vm251, %v192, 0.0
      %v268 = vsel %vm252, %v193, 0.0
      %v269 = vsel %vm253, %v194, 0.0
      %v270 = vsel %vm254, %v195, 0.0
      %v271 = vsel %vm255, %v196, 0.0
      %v272 = vmul.f32 %v256, %v264
      %v273 = vmul.f32 %v257, %v265
      %v274 = vmul.f32 %v258, %v266
      %v275 = vmul.f32 %v259, %v267
      %v276 = vmul.f32 %v260, %v268
      %v277 = vmul.f32 %v261, %v269
      %v278 = vmul.f32 %v262, %v270
      %v279 = vmul.f32 %v263, %v271
      %v280 = vadd.f32 %v272, %v273
      %v281 = vadd.f32 %v280, %v274
      %v282 = vadd.f32 %v281, %v275
      %v283 = vadd.f32 %v282, %v276
      %v284 = vadd.f32 %v283, %v277
      %v285 = vadd.f32 %v284, %v278
      %v286 = vadd.f32 %v285, %v279
      %v287 = vadd.f32 %v286, 0.0
      %v288 = vadd.f32 %v256, %v257
      %v289 = vadd.f32 %v288, %v258
      %v290 = vadd.f32 %v289, %v259
      %v291 = vadd.f32 %v290, %v260
      %v292 = vadd.f32 %v291, %v261
      %v293 = vadd.f32 %v292, %v262
      %v294 = vadd.f32 %v293, %v263
      %v295 = vadd.f32 %v294, 0.0
      %v296 = vadd.f32 %v264, %v265
      %v297 = vadd.f32 %v296, %v266
      %v298 = vadd.f32 %v297, %v267
      %v299 = vadd.f32 %v298, %v268
      %v300 = vadd.f32 %v299, %v269
      %v301 = vadd.f32 %v300, %v270
      %v302 = vadd.f32 %v301, %v271
      %v303 = vadd.f32 %v302, 0.0
      %v304 = vld [vmem:[#allocation7] sm:$0xff]
      %v305 = vadd.f32 %v304, %v287
      %306 = vst [vmem:[#allocation7] sm:$0xff] %v305
      %s307 = scalar_lea.vmem [#allocation7], 8
      %v308 = vld [vmem:[%s307] sm:$0xff]
      %v309 = vadd.f32 %v308, %v295
      %310 = vst [vmem:[%s307] sm:$0xff] %v309
      %s311 = scalar_lea.vmem [#allocation7], 16
      %v312 = vld [vmem:[%s311] sm:$0xff]
      %v313 = vadd.f32 %v312, %v303
      %314 = vst [vmem:[%s311] sm:$0xff] %v313
    $region29: #{tpu_custom_call.1} parent=1 // pred_fallthru
      _
    // Predicated region
    $region30: #{tpu_custom_call.1} parent=1 // pred_check
      _
    $region31: #{tpu_custom_call.1} parent=1 // pred_check_branch
      %316 = sbr.rel (0) target = $region33
    $region32: #{tpu_custom_call.1} parent=1 // pred_region
      %s318 = ssub.s32 384, 384
      %319 = vsyncadd [#allocation4], %s318
      %s320 = sshll.u32 [#allocation7], 4
      %s321 = int_to_ptr.vmem [resolvable:$true] %s320
      %326 = dma.vmem_to_hbm [thread:$0]  %s321, 384, %s2, [#allocation4], 128, 128, 8
    $region33: #{tpu_custom_call.1} parent=1 // pred_fallthru
      _
    // Predicated region
    $region34: #{tpu_custom_call.1} parent=1 // pred_check
      _
    $region35: #{tpu_custom_call.1} parent=1 // pred_check_branch
      %328 = sbr.rel (0) target = $region37
    $region36: #{tpu_custom_call.1} parent=1 // pred_region
      %329 = dma.done [#allocation4], 384
    $region37: #{tpu_custom_call.1} parent=1 // pred_fallthru
      _
    %330 = vsyncpa [#allocation3], 1
    %331 = vsyncpa [#allocation6], 1
    %332 = vsyncpa [#allocation4], 1

</llo_original>
